<compile_context>
chip_gen: v5e
topology: v5e:2x2
jax: 0.10.0
libtpu: 0.0.40
codegen_flags: <defaults>
</compile_context>

<pallas_src>
import math

import jax
import jax.numpy as jnp
from jax import lax
from jax.experimental import pallas as pl
from jax.experimental.pallas import tpu as pltpu

W0 = 30.0
_MIB = 1 << 20
_BLOCK_BUDGET = 16 * _MIB       # target per-step working set (double-buffered)
_RESIDENT_W_BUDGET = 8 * _MIB   # max 2x(full weight) kept resident in VMEM
_K_SPLIT_THRESHOLD = 2048       # split the contraction above this d_in


def _round_up(x, m):
    return (x + m - 1) // m * m


def _pick_tn(d_out_p):
    for tn in (512, 256, 128):
        if d_out_p % tn == 0:
            return tn
    return 128


def _ensure_two_parallel_steps(B, tm, num_other, m_align):
    """Shrink tm if needed so the grid has >=2 'parallel' steps (v7x: 2 TCs)."""
    if num_other >= 2 or B <= m_align:
        return tm
    if -(-B // tm) >= 2:
        return tm
    return max(m_align, _round_up(-(-B // 2), m_align))


# ---------------------------------------------------------------------------
# Kernels
# ---------------------------------------------------------------------------
def _sine_matmul_kernel(x_ref, w_ref, o_ref):
    # x_ref: (tm, d_in), w_ref: (d_in, n_block), o_ref: (tm, n_block)
    # w0 is pre-folded into w, so this is just sin(x @ W').
    z = jnp.dot(x_ref[...], w_ref[...], preferred_element_type=jnp.float32)
    o_ref[...] = jnp.sin(z).astype(o_ref.dtype)


def _make_ksplit_kernel(d_in, tk, mask_k):
    def kernel(x_ref, w_ref, o_ref, acc_ref):
        k = pl.program_id(2)

        @pl.when(k == 0)
        def _():
            acc_ref[...] = jnp.zeros_like(acc_ref)

        x = x_ref[...]
        w = w_ref[...]
        if mask_k:
            # Zero the out-of-range K tail of the partial final block (on both
            # operands, so stale-VMEM garbage can never reach the accumulator).
            base = k * tk
            xc = lax.broadcasted_iota(jnp.int32, x.shape, 1) + base
            x = jnp.where(xc < d_in, x, 0.0)
            wr = lax.broadcasted_iota(jnp.int32, w.shape, 0) + base
            w = jnp.where(wr < d_in, w, 0.0)

        acc_ref[...] += jnp.dot(x, w, preferred_element_type=jnp.float32)

        @pl.when(k == pl.num_programs(2) - 1)
        def _():
            o_ref[...] = jnp.sin(acc_ref[...]).astype(o_ref.dtype)

    return kernel


# ---------------------------------------------------------------------------
# Weight preparation (parameter-load time, NOT per call)
# ---------------------------------------------------------------------------
def prepare_sine_weight(w, *, w0=W0):
    """w: (d_out, d_in) PyTorch nn.Linear layout.

    Returns a (d_in, d_out_p) f32 array with w0 folded in and d_out
    zero-padded to a multiple of 128 (lane-dense, MXU-native (K, N) RHS).
    """
    d_out, d_in = w.shape
    d_out_p = _round_up(d_out, 128)
    wt = (jnp.asarray(w, jnp.float32) * jnp.float32(w0)).T       # (d_in, d_out)
    if d_out_p != d_out:
        wt = jnp.pad(wt, ((0, 0), (0, d_out_p - d_out)))
    return wt


# ---------------------------------------------------------------------------
# Forward pass
# ---------------------------------------------------------------------------
def sine_update_prepared(x, w_prepped, d_out, *, out_dtype=None, tm=None,
                         tk=None, force_k_split=False, w_resident=None):
    """x: (B, d_in); w_prepped: (d_in, d_out_p) from prepare_sine_weight."""
    B, d_in = x.shape
    d_in_w, d_out_p = w_prepped.shape
    assert d_in_w == d_in, "weight was prepared for a different d_in"
    assert d_out_p % 128 == 0 and d_out <= d_out_p

    out_dtype = jnp.dtype(x.dtype if out_dtype is None else out_dtype)
    out_isz = out_dtype.itemsize
    m_align = 16 if out_isz == 2 else 8

    k_split = force_k_split or d_in > _K_SPLIT_THRESHOLD

    if not k_split:
        w_bytes2 = 2 * 4 * d_in * d_out_p          # double-buffered full weight
        if w_resident is None:
            w_resident = w_bytes2 <= _RESIDENT_W_BUDGET

        if w_resident:
            # ---- resident-W path: 1-D grid over the batch ------------------
            per_row = 2 * (4 * d_in + out_isz * d_out_p)
            tm_cap = max(m_align,
                         ((_BLOCK_BUDGET - w_bytes2) // per_row) // m_align * m_align)
            if tm is None:
                tm = min(512, _round_up(B, m_align), tm_cap)
            tm = max(m_align, _round_up(min(tm, tm_cap), m_align))
            tm = _ensure_two_parallel_steps(B, tm, 1, m_align)
            num_i = pl.cdiv(B, tm)

            need = w_bytes2 + 2 * tm * (4 * d_in + out_isz * d_out_p)
            out = pl.pallas_call(
                _sine_matmul_kernel,
                out_shape=jax.ShapeDtypeStruct((B, d_out_p), out_dtype),
                grid_spec=pltpu.PrefetchScalarGridSpec(
                    num_scalar_prefetch=0,
                    grid=(num_i,),
                    in_specs=[
                        pl.BlockSpec((tm, d_in), lambda i: (i, 0)),
                        # Constant index -> the weight is DMA'd exactly once.
                        # TODO(synk): pipeline_mode=pl.Buffered(1) would halve its
                        #             VMEM footprint once validated on-device.
                        pl.BlockSpec((d_in, d_out_p), lambda i: (0, 0)),
                    ],
                    out_specs=pl.BlockSpec((tm, d_out_p), lambda i: (i, 0)),
                ),
                compiler_params=pltpu.CompilerParams(
                    dimension_semantics=("parallel",),
                    vmem_limit_bytes=int(min(56 * _MIB, max(16 * _MIB, 2 * need))),
                ),
                cost_estimate=pl.CostEstimate(
                    flops=2 * B * d_in * d_out_p,
                    transcendentals=B * d_out_p,
                    bytes_accessed=(4 * B * d_in + 4 * d_in * d_out_p
                                    + out_isz * B * d_out_p),
                ),
            )(x, w_prepped)
        else:
            # ---- tiled path: weight axis OUTERMOST (each W tile fetched once)
            tn = _pick_tn(d_out_p)
            num_j = d_out_p // tn
            w_tile2 = 2 * 4 * d_in * tn
            per_row = 2 * (4 * d_in + out_isz * tn)
            tm_cap = max(m_align,
                         ((_BLOCK_BUDGET - w_tile2) // per_row) // m_align * m_align)
            if tm is None:
                tm = min(512, _round_up(B, m_align), tm_cap)
            tm = max(m_align, _round_up(min(tm, tm_cap), m_align))
            tm = _ensure_two_parallel_steps(B, tm, num_j, m_align)
            num_i = pl.cdiv(B, tm)

            need = w_tile2 + 2 * tm * (4 * d_in + out_isz * tn)
            out = pl.pallas_call(
                _sine_matmul_kernel,
                out_shape=jax.ShapeDtypeStruct((B, d_out_p), out_dtype),
                grid_spec=pltpu.PrefetchScalarGridSpec(
                    num_scalar_prefetch=0,
                    grid=(num_j, num_i),
                    in_specs=[
                        pl.BlockSpec((tm, d_in), lambda j, i: (i, 0)),
                        pl.BlockSpec((d_in, tn), lambda j, i: (0, j)),
                    ],
                    out_specs=pl.BlockSpec((tm, tn), lambda j, i: (i, j)),
                ),
                compiler_params=pltpu.CompilerParams(
                    dimension_semantics=("parallel", "parallel"),
                    vmem_limit_bytes=int(min(56 * _MIB, max(16 * _MIB, 2 * need))),
                ),
                cost_estimate=pl.CostEstimate(
                    flops=2 * B * d_in * d_out_p,
                    transcendentals=B * d_out_p,
                    bytes_accessed=(num_j * 4 * B * d_in + 4 * d_in * d_out_p
                                    + out_isz * B * d_out_p),
                ),
            )(x, w_prepped)
    else:
        # ---- K-split path (large d_in; bounds per-step VMEM, esp. v7x) -----
        tn = _pick_tn(d_out_p)
        num_j = d_out_p // tn
        if tk is None:
            tk = 512
        tk = max(128, _round_up(min(tk, _round_up(d_in, 128)), 128))
        num_k = pl.cdiv(d_in, tk)
        if tm is None:
            tm = min(256, _round_up(B, m_align))
        tm = max(m_align, _round_up(tm, m_align))
        tm = _ensure_two_parallel_steps(B, tm, num_j, m_align)
        num_i = pl.cdiv(B, tm)
        mask_k = (d_in % tk) != 0

        need = 2 * (4 * tm * tk + 4 * tk * tn + out_isz * tm * tn) + 4 * tm * tn
        out = pl.pallas_call(
            _make_ksplit_kernel(d_in, tk, mask_k),
            out_shape=jax.ShapeDtypeStruct((B, d_out_p), out_dtype),
            grid_spec=pltpu.PrefetchScalarGridSpec(
                num_scalar_prefetch=0,
                grid=(num_i, num_j, num_k),
                in_specs=[
                    pl.BlockSpec((tm, tk), lambda i, j, k: (i, k)),
                    pl.BlockSpec((tk, tn), lambda i, j, k: (k, j)),
                ],
                out_specs=pl.BlockSpec((tm, tn), lambda i, j, k: (i, j)),
                scratch_shapes=[pltpu.VMEM((tm, tn), jnp.float32)],
            ),
            compiler_params=pltpu.CompilerParams(
                dimension_semantics=("parallel", "parallel", "arbitrary"),
                vmem_limit_bytes=int(min(56 * _MIB, max(16 * _MIB, 2 * need))),
            ),
            cost_estimate=pl.CostEstimate(
                flops=2 * B * d_in * d_out_p,
                transcendentals=B * d_out_p,
                bytes_accessed=(num_j * 4 * B * d_in + num_i * 4 * d_in * d_out_p
                                + out_isz * B * d_out_p),
            ),
        )(x, w_prepped)

    if d_out_p != d_out:
        out = out[:, :d_out]
    return out


def sine_update(x, w, *, w0=W0, **kwargs):
    """Convenience wrapper: x (B, d_in), w (d_out, d_in) PyTorch layout.
    Preps W per call; prefer prepare_sine_weight + sine_update_prepared in a
    real model so the prep is done once at parameter-load time."""
    w_prepped = prepare_sine_weight(w, w0=w0)
    return sine_update_prepared(x, w_prepped, w.shape[0], **kwargs)


if __name__ == "__main__":
    key = jax.random.PRNGKey(0)
    kx, kw, kx2, kx3, kw3 = jax.random.split(key, 5)

    # --- Test 1: module-scale shapes, resident-W path -----------------------
    B, d_in, d_out = 8, 32, 64
    bound = 1.0 / math.sqrt(d_in)
    w = jax.random.uniform(kw, (d_out, d_in), jnp.float32, -bound, bound)
    x = jax.random.normal(kx, (B, d_in), jnp.float32)

    w_prepped = prepare_sine_weight(w)           # once, at "load time"
    out = jax.block_until_ready(sine_update_prepared(x, w_prepped, d_out))
    ref = jnp.sin(W0 * (x @ w.T))
    assert out.shape == (B, d_out)
    assert jnp.allclose(out, ref, atol=3e-4, rtol=1e-4), "mismatch (resident)"

    # --- Test 2: ragged batch (masked final block, no jnp.pad of x) ---------
    B2 = 1000
    x2 = jax.random.normal(kx2, (B2, d_in), jnp.float32)
    out2 = jax.block_until_ready(sine_update_prepared(x2, w_prepped, d_out))
    ref2 = jnp.sin(W0 * (x2 @ w.T))
    assert out2.shape == (B2, d_out)
    assert jnp.allclose(out2, ref2, atol=3e-4, rtol=1e-4), "mismatch (ragged B)"

    # --- Test 3: bf16 output option (cast AFTER sin) -------------------------
    out_bf = jax.block_until_ready(
        sine_update_prepared(x2[:32], w_prepped, d_out, out_dtype=jnp.bfloat16))
    assert out_bf.dtype == jnp.bfloat16
    assert jnp.allclose(out_bf.astype(jnp.float32),
                        jnp.sin(W0 * (x2[:32] @ w.T)),
                        atol=2e-2, rtol=2e-2), "mismatch (bf16 out)"

    # --- Test 4: non-resident tiled path (weight axis outermost) ------------
    B4, d_in4, d_out4 = 256, 64, 384
    bound4 = 1.0 / math.sqrt(d_in4)
    w4 = jax.random.uniform(kw3, (d_out4, d_in4), jnp.float32, -bound4, bound4)
    x4 = jax.random.normal(kx3, (B4, d_in4), jnp.float32)
    w4p = prepare_sine_weight(w4)
    out4 = jax.block_until_ready(
        sine_update_prepared(x4, w4p, d_out4, w_resident=False))
    assert jnp.allclose(out4, jnp.sin(W0 * (x4 @ w4.T)),
                        atol=3e-4, rtol=1e-4), "mismatch (tiled)"

    # --- Test 5: K-split path with a ragged contraction dim -----------------
    B5, d_in5, d_out5 = 64, 300, 256
    bound5 = 1.0 / math.sqrt(d_in5)
    kw5, kx5 = jax.random.split(jax.random.PRNGKey(1))
    w5 = jax.random.uniform(kw5, (d_out5, d_in5), jnp.float32, -bound5, bound5)
    x5 = jax.random.normal(kx5, (B5, d_in5), jnp.float32)
    w5p = prepare_sine_weight(w5)
    out5 = jax.block_until_ready(
        sine_update_prepared(x5, w5p, d_out5, force_k_split=True, tk=128))
    assert jnp.allclose(out5, jnp.sin(W0 * (x5 @ w5.T)),
                        atol=3e-4, rtol=1e-4), "mismatch (k-split)"

    print("KERNEL_OK")
</pallas_src>

<mosaic_0001>
module attributes {stable_mosaic.version = 11 : i64} {
  func.func @_sine_matmul_kernel(%arg0: i32, %arg1: memref<8x32xf32, #tpu.memory_space<vmem>>, %arg2: memref<32x128xf32, #tpu.memory_space<vmem>>, %arg3: memref<8x128xf32, #tpu.memory_space<vmem>>) attributes {dimension_semantics = [#tpu.dimension_semantics<parallel>], iteration_bounds = array<i64: 1>, scalar_prefetch = 0 : i64, scratch_operands = 0 : i64, tpu.core_type = #tpu.core_type<tc>, window_params = [{transform_indices = @transform_0, window_bounds = array<i64: 8, 32>}, {pipeline_mode = #tpu.pipeline_mode<synchronous>, transform_indices = @transform_1, window_bounds = array<i64: 32, 128>}, {transform_indices = @transform_2, window_bounds = array<i64: 8, 128>}]} {
    %c0 = arith.constant 0 : index
    %c0_0 = arith.constant 0 : index
    %0 = vector.load %arg1[%c0, %c0_0] : memref<8x32xf32, #tpu.memory_space<vmem>>, vector<8x32xf32>
    %c0_1 = arith.constant 0 : index
    %c0_2 = arith.constant 0 : index
    %1 = vector.load %arg2[%c0_1, %c0_2] : memref<32x128xf32, #tpu.memory_space<vmem>>, vector<32x128xf32>
    %cst = arith.constant dense<0.000000e+00> : vector<8x128xf32>
    %2 = tpu.matmul %0, %1, %cst {dimension_numbers = #tpu.dot_dimension_numbers<[1], [0], [0], [1], [0, 0, 1, 1], [], []>} : vector<8x32xf32>, vector<32x128xf32>, vector<8x128xf32> -> vector<8x128xf32>
    %3 = math.sin %2 : vector<8x128xf32>
    %c0_3 = arith.constant 0 : index
    %c0_4 = arith.constant 0 : index
    %4 = vector.load %arg3[%c0_3, %c0_4] : memref<8x128xf32, #tpu.memory_space<vmem>>, vector<8x128xf32>
    tpu.vector_store %arg3[%c0_3, %c0_4], %3 {strides = array<i32>} : memref<8x128xf32, #tpu.memory_space<vmem>>, vector<8x128xf32>,
    return
  }
  func.func @transform_0(%arg0: i32) -> (i32, i32) {
    %c0_i32 = arith.constant 0 : i32
    %c0_i32_0 = arith.constant 0 : i32
    return %arg0, %c0_i32 : i32, i32
  }
  func.func @transform_1(%arg0: i32) -> (i32, i32) {
    %c0_i32 = arith.constant 0 : i32
    %c0_i32_0 = arith.constant 0 : i32
    %c0_i32_1 = arith.constant 0 : i32
    return %c0_i32, %c0_i32_0 : i32, i32
  }
  func.func @transform_2(%arg0: i32) -> (i32, i32) {
    %c0_i32 = arith.constant 0 : i32
    %c0_i32_0 = arith.constant 0 : i32
    return %arg0, %c0_i32 : i32, i32
  }
}

</mosaic_0001>

<llo_original>
// kernel: tpu_custom_call.1
$region0: #{tpu_custom_call.1}
  #allocation0 [shape = 'u32[]', space=smem, size = 0x4, offset = 0x4, fixed_abs, tag = 'smem constant byte address 0x4 - core index']
  #allocation1 [shape = 'u32[72,128]{1,0:T(1,128)}', space=vmem, size = 0x9000, scoped, tag = 'internal scratch']
  %s0 = inlined_call_operand.hbm [shape: f32[8,32], index: 0, kind: input, shape index: {}]
  %s1 = inlined_call_operand.hbm [shape: f32[32,128], index: 1, kind: input, shape index: {}]
  %s2 = inlined_call_operand.hbm [shape: f32[8,128], index: 2, kind: output, shape index: {}]
  %s3 = sld [smem:[#allocation0]]
  $region26: #{tpu_custom_call.1} parent=0
    _
  %s5 = ssub.s32 1, %s3
  %s6 = scalar_select 0, %s5, %s3
  $region1: #{tpu_custom_call.1} parent=0
    #allocation2 [shape = 'u8[4096]{0}', space=vmem, size = 0x1000, scoped, tag = 'input window, operand 0, single buffered']
    #allocation3 [shape = 's32[1]{0}', space=sflag, size = 0x4, scoped, tag = 'scoped memory for tpu_custom_call.1']
    #allocation4 [shape = 's32[1]{0}', space=sflag, size = 0x4, scoped, tag = 'scoped memory for tpu_custom_call.1']
    #allocation5 [shape = 'u8[16384]{0}', space=vmem, size = 0x4000, scoped, tag = 'input window, operand 1, single buffered']
    #allocation6 [shape = 's32[1]{0}', space=sflag, size = 0x4, scoped, tag = 'scoped memory for tpu_custom_call.1']
    #allocation7 [shape = 'u8[4096]{0}', space=vmem, size = 0x1000, scoped, tag = 'output window, operand 0, single buffered']
    %7 = vsyncpa [#allocation3], 0
    %8 = vsyncpa [#allocation6], 0
    %9 = vsyncpa [#allocation4], 0
    // Predicated region
    $region2: #{tpu_custom_call.1} parent=1 // pred_check
      _
    $region3: #{tpu_custom_call.1} parent=1 // pred_check_branch
      %11 = sbr.rel (0) target = $region5
    $region4: #{tpu_custom_call.1} parent=1 // pred_region
      %13 = vsyncadd [#allocation3], 0
      %s15 = sshll.u32 %s0, 4
      %s16 = int_to_ptr.hbm [resolvable:$true] %s15
      %s17 = sshll.u32 [#allocation2], 4
      %s18 = int_to_ptr.vmem [resolvable:$true] %s17
      %20 = dma.hbm_to_vmem [thread:$0]  %s16, 128, %s18, [#allocation3]
    $region5: #{tpu_custom_call.1} parent=1 // pred_fallthru
      _
    // Predicated region
    $region6: #{tpu_custom_call.1} parent=1 // pred_check
      _
    $region7: #{tpu_custom_call.1} parent=1 // pred_check_branch
      %22 = sbr.rel (0) target = $region9
    $region8: #{tpu_custom_call.1} parent=1 // pred_region
      %24 = vsyncadd [#allocation6], 0
      %s25 = sshll.u32 %s1, 4
      %s26 = int_to_ptr.hbm [resolvable:$true] %s25
      %s27 = sshll.u32 [#allocation5], 4
      %s28 = int_to_ptr.vmem [resolvable:$true] %s27
      %33 = dma.hbm_to_vmem [thread:$0]  %s26, 512, %s28, [#allocation6], 128, 128, 8
    $region9: #{tpu_custom_call.1} parent=1 // pred_fallthru
      _
    // Predicated region
    $region10: #{tpu_custom_call.1} parent=1 // pred_check
      _
    $region11: #{tpu_custom_call.1} parent=1 // pred_check_branch
      %35 = sbr.rel (0) target = $region13
    $region12: #{tpu_custom_call.1} parent=1 // pred_region
      %37 = dma.done [#allocation3], 128
    $region13: #{tpu_custom_call.1} parent=1 // pred_fallthru
      _
    // Predicated region
    $region14: #{tpu_custom_call.1} parent=1 // pred_check
      _
    $region15: #{tpu_custom_call.1} parent=1 // pred_check_branch
      %39 = sbr.rel (0) target = $region17
    $region16: #{tpu_custom_call.1} parent=1 // pred_region
      %41 = dma.done [#allocation6], 512
    $region17: #{tpu_custom_call.1} parent=1 // pred_fallthru
      _
    %v42 = vld [vmem:[#allocation2] sm:$0xff]
    %v43 = vld [vmem:[#allocation5] sm:$0xff]
    %v44 = vld [vmem:[#allocation5 + $0x8] sm:$0xff]
    %v45 = vld [vmem:[#allocation5 + $0x10] sm:$0xff]
    %v46 = vld [vmem:[#allocation5 + $0x18] sm:$0xff]
    %vm47 = vcmask 261120
    %v49 = vsel %vm47, %v42, 0
    %51 = vmatpush.msra.mxu0 0.0
    %52 = vmatpush.msra.mxu0 0.0
    %53 = vmatpush.msra.mxu0 0.0
    %54 = vmatpush.msra.mxu0 0.0
    %55 = vmatpush.msra.mxu0 0.0
    %56 = vmatpush.msra.mxu0 0.0
    %57 = vmatpush.msra.mxu0 0.0
    %58 = vmatpush.msra.mxu0 0.0
    %59 = vmatpush.msra.mxu0 0.0
    %60 = vmatpush.msra.mxu0 0.0
    %61 = vmatpush.msra.mxu0 0.0
    %62 = vmatpush.msra.mxu0 0.0
    %63 = vmatpush.msra.mxu0 %v46
    %64 = vmatpush.msra.mxu0 %v45
    %65 = vmatpush.msra.mxu0 %v44
    %66 = vmatpush.msra.mxu0 %v43
    %67 = vmatmul.f32.gmra.mxu0 %v49
    %v68 = vpop.f32.mrf.mxu0
    %v69 = vadd.f32 0.0, %v68
    %70 = vdwg.mxu0
    %v71 = vand.u32 2147483647, %v69
    %vm72 = vcmp.le.f32.partialorder %v71, 0.7853982
    %vm73 = vcmp.lt.s32.totalorder %v69, 0
    %v74 = vand.u32 %v69, 2139095040
    %v75 = vshrl.u32 %v74, 23
    %v76 = vsub.s32 %v75, 127
    %v77 = vand.u32 2147483647, %v69
    %v78 = vand.u32 %v77, 8388607
    %v79 = vor.u32 %v78, 8388608
    %v80 = vsub.s32 0, %v79
    %v81 = vadd.s32 %v76, 1
    %vm82 = vcmp.gt.s32.totalorder %v81, 0
    %v83 = vsel %vm82, %v81, 0
    %v84 = vshrl.u32 %v83, 5
    %v85 = vand.u32 %v83, 31
    %v86 = vsub.s32 32, %v85
    %v87 = vshrl.u32 683565275, %v86
    %v88 = vshll.u32 683565275, %v85
    %v89 = vshrl.u32 2475754826, %v86
    %v90 = vor.u32 %v88, %v89
    %v91 = vshll.u32 2475754826, %v85
    %v92 = vshrl.u32 2131351028, %v86
    %v93 = vor.u32 %v91, %v92
    %v94 = vshll.u32 2131351028, %v85
    %v95 = vshrl.u32 2102212464, %v86
    %v96 = vor.u32 %v94, %v95
    %v97 = vshll.u32 2102212464, %v85
    %v98 = vshrl.u32 920167782, %v86
    %v99 = vor.u32 %v97, %v98
    %v100 = vshll.u32 920167782, %v85
    %v101 = vshrl.u32 1326507024, %v86
    %v102 = vor.u32 %v100, %v101
    %vm103 = vcmp.lt.s32.totalorder %v84, 1
    %vm104 = vcmp.lt.s32.totalorder %v84, 2
    %vm105 = vcmp.lt.s32.totalorder %v84, 3
    %vm106 = vcmp.lt.s32.totalorder %v84, 4
    %v107 = vsel %vm103, %v87, %v90
    %v108 = vsel %vm106, %v96, 2102212464
    %v109 = vsel %vm105, %v93, %v108
    %v110 = vsel %vm104, %v107, %v109
    %v111 = vsel %vm103, %v90, %v93
    %v112 = vsel %vm106, %v99, 920167782
    %v113 = vsel %vm105, %v96, %v112
    %v114 = vsel %vm104, %v111, %v113
    %v115 = vsel %vm103, %v93, %v96
    %v116 = vsel %vm106, %v102, 1326507024
    %v117 = vsel %vm105, %v99, %v116
    %v118 = vsel %vm104, %v115, %v117
    %v119 = vshll.u32 %v79, 8
    %v120 = vand.u32 %v119, 65535
    %v121 = vshrl.u32 %v119, 16
    %v122 = vand.u32 %v118, 65535
    %v123 = vshrl.u32 %v118, 16
    %v124 = vmul.u32 %v120, %v122
    %v125 = vmul.u32 %v120, %v123
    %v126 = vmul.u32 %v121, %v122
    %v127 = vmul.u32 %v121, %v123
    %v128 = vshll.u32 %v125, 16
    %v129 = vshrl.u32 %v125, 16
    %v130 = vshll.u32 %v126, 16
    %v131 = vshrl.u32 %v126, 16
    %vm132 = vc.u32 %v124, %v128
    %v133 = vsel %vm132, 1, 0
    %v134 = vadd.s32 %v124, %v128
    %v135 = vadd.s32 %v127, %v133
    %vm136 = vc.u32 %v134, %v130
    %v137 = vsel %vm136, 1, 0
    %v138 = vadd.s32 %v134, %v130
    %v139 = vadd.s32 %v135, %v137
    %v140 = vadd.s32 %v139, %v129
    %v141 = vadd.s32 %v140, %v131
    %v142 = vand.u32 %v119, 65535
    %v143 = vshrl.u32 %v119, 16
    %v144 = vand.u32 %v114, 65535
    %v145 = vshrl.u32 %v114, 16
    %v146 = vmul.u32 %v142, %v144
    %v147 = vmul.u32 %v142, %v145
    %v148 = vmul.u32 %v143, %v144
    %v149 = vmul.u32 %v143, %v145
    %v150 = vshll.u32 %v147, 16
    %v151 = vshrl.u32 %v147, 16
    %v152 = vshll.u32 %v148, 16
    %v153 = vshrl.u32 %v148, 16
    %vm154 = vc.u32 %v146, %v150
    %v155 = vsel %vm154, 1, 0
    %v156 = vadd.s32 %v146, %v150
    %v157 = vadd.s32 %v149, %v155
    %vm158 = vc.u32 %v156, %v152
    %v159 = vsel %vm158, 1, 0
    %v160 = vadd.s32 %v156, %v152
    %v161 = vadd.s32 %v157, %v159
    %v162 = vadd.s32 %v161, %v151
    %v163 = vadd.s32 %v162, %v153
    %v164 = vmul.u32 %v119, %v110
    %v165 = vadd.s32 %v141, %v160
    %vm166 = vc.u32 %v141, %v160
    %v167 = vadd.s32 %v163, 1
    %v168 = vsel %vm166, %v167, %v163
    %v169 = vadd.s32 %v164, %v168
    %v170 = vadd.s32 %v169, 536870912
    %v171 = vshrl.u32 %v170, 30
    %v172 = vshll.u32 %v171, 30
    %v173 = vsub.s32 %v169, %v172
    %vm174 = vcmp.lt.s32.totalorder %v173, 0
    %v175 = vsub.s32 0, %v173
    %v176 = vsel %vm174, %v175, %v173
    %v177 = vclz %v176
    %v178 = vsub.s32 %v177, 2
    %vm179 = vcmp.gt.s32.totalorder 0, %v178
    %v180 = vsel %vm179, 0, %v178
    %v181 = vsub.s32 32, %v180
    %v182 = vshll.u32 %v173, %v180
    %v183 = vshrl.u32 %v165, %v181
    %v184 = vor.u32 %v182, %v183
    %v185 = vsub.s32 4294967266, %v180
    %v186 = vadd.s32 %v185, 127
    %v187 = vshll.u32 %v186, 23
    %v188 = vor.u32 4788187, %v187
    %v189 = vand.u32 2147483647, %v188
    %v191 = vcvt.s32.f32 %v184
    %v192 = vmul.f32 %v191, %v189
    %v193 = vxor.u32 %v192, 2147483648
    %v194 = vsel %vm73, %v193, %v192
    %v195 = vsub.s32 4, %v171
    %v196 = vsel %vm73, %v195, %v171
    %v197 = vsel %vm72, %v69, %v194
    %v198 = vsel %vm72, 0, %v196
    %v199 = vmul.f32 %v197, %v197
    %v200 = vmul.f32 %v199, -0.001358992
    %v201 = vadd.f32 %v200, 0.041655596
    %v202 = vmul.f32 %v199, %v201
    %v203 = vadd.f32 %v202, -0.4999988
    %v204 = vmul.f32 %v199, %v203
    %v205 = vadd.f32 1.0, %v204
    %v206 = vmul.f32 %v197, %v197
    %v207 = vmul.f32 %v206, -0.00019511016
    %v208 = vadd.f32 %v207, 0.008332121
    %v209 = vmul.f32 %v206, %v208
    %v210 = vadd.f32 %v209, -0.16666654
    %v211 = vmul.f32 %v206, %v210
    %v212 = vadd.f32 %v211, 1.0
    %v213 = vmul.f32 %v212, %v197
    %vm214 = vweird.f32 %v69
    %v215 = vadd.s32 %v198, 3
    %v216 = vand.u32 %v215, 3
    %vm217 = vcmp.lt.s32.totalorder %v216, 2
    %vm218 = vcmp.eq.s32.totalorder %v216, 0
    %v219 = vxor.u32 %v213, 2147483648
    %v220 = vsel %vm218, %v205, %v219
    %vm221 = vcmp.eq.s32.totalorder %v216, 2
    %v222 = vxor.u32 %v205, 2147483648
    %v223 = vsel %vm221, %v222, %v213
    %v224 = vsel %vm217, %v220, %v223
    %v225 = vsel %vm214, nan, %v224
    %226 = vst [vmem:[#allocation7] sm:$0xff] %v225
    // Predicated region
    $region18: #{tpu_custom_call.1} parent=1 // pred_check
      _
    $region19: #{tpu_custom_call.1} parent=1 // pred_check_branch
      %228 = sbr.rel (0) target = $region21
    $region20: #{tpu_custom_call.1} parent=1 // pred_region
      %230 = vsyncadd [#allocation4], 0
      %s232 = sshll.u32 [#allocation7], 4
      %s233 = int_to_ptr.vmem [resolvable:$true] %s232
      %s234 = sshll.u32 %s2, 4
      %s235 = int_to_ptr.hbm [resolvable:$true] %s234
      %237 = dma.vmem_to_hbm [thread:$0]  %s233, 128, %s235, [#allocation4]
    $region21: #{tpu_custom_call.1} parent=1 // pred_fallthru
      _
    // Predicated region
    $region22: #{tpu_custom_call.1} parent=1 // pred_check
      _
    $region23: #{tpu_custom_call.1} parent=1 // pred_check_branch
      %239 = sbr.rel (0) target = $region25
    $region24: #{tpu_custom_call.1} parent=1 // pred_region
      %241 = dma.done [#allocation4], 128
    $region25: #{tpu_custom_call.1} parent=1 // pred_fallthru
      _
    %242 = vsyncpa [#allocation3], 1
    %243 = vsyncpa [#allocation6], 1
    %244 = vsyncpa [#allocation4], 1

</llo_original>
